<compile_context>
chip_gen: v5e
topology: v5e:2x2
jax: 0.10.0
libtpu: 0.0.40
codegen_flags: <defaults>
</compile_context>

<pallas_src>
import jax
import jax.numpy as jnp
from jax.experimental import pallas as pl
from jax.experimental.pallas import tpu as pltpu

HID1 = 128   # fc1 width
HID2 = 256   # fc2 width


def _round_up(x, m):
    return (x + m - 1) // m * m


# ----------------------------- kernel -------------------------------------- #

def _dqn_kernel(x_ref, w1_ref, b1_ref, w2_ref, b2_ref, wh_ref, bh_ref, out_ref):
    # fc1 + relu  (bias/ReLU epilogue stays in f32)
    h1 = jnp.dot(x_ref[...], w1_ref[...], preferred_element_type=jnp.float32)
    h1 = jnp.maximum(h1 + b1_ref[...], 0.0)
    # fc2 + relu
    h2 = jnp.dot(h1.astype(w2_ref.dtype), w2_ref[...],
                 preferred_element_type=jnp.float32)
    h2 = jnp.maximum(h2 + b2_ref[...], 0.0)
    # fused action[+dueling value] head, zero-padded to a multiple of 8 cols:
    # cols [0:n_action] = action head, col n_action = value head (if dueling).
    q = jnp.dot(h2.astype(wh_ref.dtype), wh_ref[...],
                preferred_element_type=jnp.float32)
    out_ref[...] = (q + bh_ref[...]).astype(out_ref.dtype)


# --------------------------- tiling helpers --------------------------------- #

def _is_two_core_chip():
    """True on chips whose TensorCores share the grid via 'parallel' axes (v7x)."""
    try:
        kind = jax.devices()[0].device_kind.lower()
    except Exception:
        return False
    return ("v7" in kind) or ("tpu7" in kind) or ("7x" in kind)


def _pick_tile(B, block_batch, *, want_multi_step):
    """Pick (TB, Bp): batch tile (multiple of 8) and padded batch (multiple of TB)."""
    B8 = _round_up(B, 8)
    cap = _round_up(max(8, min(block_batch, B8)), 8)
    # Prefer a tile that divides the 8-row-rounded batch (avoids padding x),
    # unless that would shrink the tile below half the cap.
    tb = None
    t = cap
    while t >= 8:
        if B8 % t == 0:
            tb = t
            break
        t -= 8
    if tb is None or tb < max(8, cap // 2):
        tb = cap
    Bp = _round_up(B, tb)
    # v7x: guarantee >= 2 grid steps so the 'parallel' axis shards across both TCs.
    if want_multi_step and Bp // tb < 2 and Bp >= 16:
        half = _round_up(Bp // 2, 8)
        t = half
        tb2 = 8
        while t >= 8:
            if Bp % t == 0:
                tb2 = t
                break
            t -= 8
        tb = tb2
        Bp = _round_up(B, tb)
    return tb, Bp


# ----------------------------- wrapper -------------------------------------- #

def dqn_forward(x, params, use_dueling=False, *, block_batch=1024):
    """Pallas forward for DQNNet.  x: (B, space_n)."""
    B, space_n = x.shape
    n_action = int(params["n_action"])
    w1, b1 = params["w1"], params["b1"]
    w2, b2 = params["w2"], params["b2"]
    wh, bh = params["wh"], params["bh"]
    head = wh.shape[1]                 # padded head width (multiple of 8)
    wdtype = w1.dtype

    TB, Bp = _pick_tile(B, block_batch, want_multi_step=_is_two_core_chip())
    x = x.astype(wdtype)               # bf16 by default: halves x HBM traffic
    if Bp != B:
        x = jnp.pad(x, ((0, Bp - B), (0, 0)))   # usually avoided by _pick_tile
    grid = (Bp // TB,)

    w_isz = jnp.dtype(wdtype).itemsize
    flops = 2 * Bp * (space_n * HID1 + HID1 * HID2 + HID2 * head)
    bytes_accessed = int(
        Bp * space_n * w_isz                                    # x in
        + Bp * head * 4                                          # out (f32)
        + (space_n * HID1 + HID1 * HID2 + HID2 * head) * w_isz   # weights
        + (HID1 + HID2 + head) * 4)                              # biases

    out = pl.pallas_call(
        _dqn_kernel,
        out_shape=jax.ShapeDtypeStruct((Bp, head), jnp.float32),
        grid=grid,
        in_specs=[
            pl.BlockSpec((TB, space_n), lambda i: (i, 0)),      # x: tiled over batch
            pl.BlockSpec((space_n, HID1), lambda i: (0, 0)),    # w1: resident
            pl.BlockSpec((1, HID1), lambda i: (0, 0)),          # b1
            pl.BlockSpec((HID1, HID2), lambda i: (0, 0)),       # w2
            pl.BlockSpec((1, HID2), lambda i: (0, 0)),          # b2
            pl.BlockSpec((HID2, head), lambda i: (0, 0)),       # fused head weight
            pl.BlockSpec((1, head), lambda i: (0, 0)),          # fused head bias
        ],
        out_specs=pl.BlockSpec((TB, head), lambda i: (i, 0)),   # last dim == full dim
        compiler_params=pltpu.CompilerParams(
            dimension_semantics=("parallel",),
            vmem_limit_bytes=32 * 1024 * 1024,
        ),
        cost_estimate=pl.CostEstimate(
            flops=flops, transcendentals=0, bytes_accessed=bytes_accessed),
    )(x, w1, b1, w2, b2, wh, bh)

    q = out[:B, :n_action]
    if use_dueling:
        v = out[:B, n_action:n_action + 1]
        # torch.mean(q) is a GLOBAL mean over (B, n_action); computed here so
        # batch tiling never changes the result.
        return v + (q - jnp.mean(q))
    return q


# ------------------------- parameter construction -------------------------- #

def init_dqn_params(key, space_n, n_action, use_dueling=False,
                    dtype=jnp.bfloat16):
    """nn.Linear-style init (U(-1/sqrt(fan_in), +)).

    Weights are pre-transposed to (in, out) and stored in `dtype` (bf16 by
    default -> full-rate MXU); biases stay f32 (the epilogue runs in f32).
    The action head (+ optional dueling value head) is fused into a single
    weight zero-padded to a multiple of 8 output columns.
    """
    n_real = n_action + (1 if use_dueling else 0)
    head = max(8, _round_up(n_real, 8))

    def linear(k, fan_in, fan_out):
        kw, kb = jax.random.split(k)
        bound = 1.0 / jnp.sqrt(jnp.float32(fan_in))
        w = jax.random.uniform(kw, (fan_in, fan_out), jnp.float32, -bound, bound)
        b = jax.random.uniform(kb, (1, fan_out), jnp.float32, -bound, bound)
        return w, b

    k1, k2, k3, k4 = jax.random.split(key, 4)
    w1, b1 = linear(k1, space_n, HID1)
    w2, b2 = linear(k2, HID1, HID2)
    wa, ba = linear(k3, HID2, n_action)

    wh = jnp.zeros((HID2, head), jnp.float32).at[:, :n_action].set(wa)
    bh = jnp.zeros((1, head), jnp.float32).at[:, :n_action].set(ba)
    if use_dueling:
        wv, bv = linear(k4, HID2, 1)
        wh = wh.at[:, n_action:n_action + 1].set(wv)
        bh = bh.at[:, n_action:n_action + 1].set(bv)

    return {
        "w1": w1.astype(dtype), "b1": b1,
        "w2": w2.astype(dtype), "b2": b2,
        "wh": wh.astype(dtype), "bh": bh,
        "n_action": n_action,
    }


def dqn_forward_ref(x, params, use_dueling=False):
    """Pure-JAX reference mirroring the kernel's dtype flow (and the PyTorch
    forward semantics, including the GLOBAL torch.mean(q) in the dueling path)."""
    n_action = int(params["n_action"])
    w1, w2, wh = params["w1"], params["w2"], params["wh"]
    h1 = jnp.maximum(jnp.dot(x.astype(w1.dtype), w1,
                             preferred_element_type=jnp.float32) + params["b1"], 0.0)
    h2 = jnp.maximum(jnp.dot(h1.astype(w2.dtype), w2,
                             preferred_element_type=jnp.float32) + params["b2"], 0.0)
    qf = jnp.dot(h2.astype(wh.dtype), wh,
                 preferred_element_type=jnp.float32) + params["bh"]
    q = qf[:, :n_action]
    if use_dueling:
        v = qf[:, n_action:n_action + 1]
        return v + (q - jnp.mean(q))
    return q


# ---------------------------------- main ------------------------------------ #

if __name__ == "__main__":
    key = jax.random.PRNGKey(0)
    kx, kp1, kp2 = jax.random.split(key, 3)

    batch, space_n, n_action = 2, 16, 8
    x = jax.random.normal(kx, (batch, space_n), jnp.float32)

    # f32 weights, plain DQN head (tight logic check)
    params_f32 = init_dqn_params(kp1, space_n, n_action, use_dueling=False,
                                 dtype=jnp.float32)
    out = jax.block_until_ready(dqn_forward(x, params_f32, use_dueling=False))
    ref = dqn_forward_ref(x, params_f32, use_dueling=False)
    assert out.shape == (batch, n_action)
    assert jnp.allclose(out, ref, atol=1e-4, rtol=1e-4)

    # bf16 weights (default), dueling head
    params_d = init_dqn_params(kp2, space_n, n_action, use_dueling=True)
    out_d = jax.block_until_ready(dqn_forward(x, params_d, use_dueling=True))
    ref_d = dqn_forward_ref(x, params_d, use_dueling=True)
    assert out_d.shape == (batch, n_action)
    assert jnp.allclose(out_d, ref_d, atol=1e-2, rtol=1e-2)

    # larger batch: exercises the big-tile / divisor / v7x two-step grid path
    xb = jax.random.normal(kx, (1000, space_n), jnp.float32)
    out_b = jax.block_until_ready(dqn_forward(xb, params_d, use_dueling=True))
    ref_b = dqn_forward_ref(xb, params_d, use_dueling=True)
    assert out_b.shape == (1000, n_action)
    assert jnp.allclose(out_b, ref_b, atol=1e-2, rtol=1e-2)

    print("KERNEL_OK")
</pallas_src>

<mosaic_0001>
module attributes {stable_mosaic.version = 11 : i64} {
  func.func @_dqn_kernel(%arg0: i32, %arg1: memref<8x16xf32, #tpu.memory_space<vmem>>, %arg2: memref<16x128xf32, #tpu.memory_space<vmem>>, %arg3: memref<1x128xf32, #tpu.memory_space<vmem>>, %arg4: memref<128x256xf32, #tpu.memory_space<vmem>>, %arg5: memref<1x256xf32, #tpu.memory_space<vmem>>, %arg6: memref<256x8xf32, #tpu.memory_space<vmem>>, %arg7: memref<1x8xf32, #tpu.memory_space<vmem>>, %arg8: memref<8x8xf32, #tpu.memory_space<vmem>>) attributes {dimension_semantics = [#tpu.dimension_semantics<parallel>], iteration_bounds = array<i64: 1>, scalar_prefetch = 0 : i64, scratch_operands = 0 : i64, tpu.core_type = #tpu.core_type<tc>, window_params = [{transform_indices = @transform_0, window_bounds = array<i64: 8, 16>}, {pipeline_mode = #tpu.pipeline_mode<synchronous>, transform_indices = @transform_1, window_bounds = array<i64: 16, 128>}, {pipeline_mode = #tpu.pipeline_mode<synchronous>, transform_indices = @transform_2, window_bounds = array<i64: 1, 128>}, {pipeline_mode = #tpu.pipeline_mode<synchronous>, transform_indices = @transform_3, window_bounds = array<i64: 128, 256>}, {pipeline_mode = #tpu.pipeline_mode<synchronous>, transform_indices = @transform_4, window_bounds = array<i64: 1, 256>}, {pipeline_mode = #tpu.pipeline_mode<synchronous>, transform_indices = @transform_5, window_bounds = array<i64: 256, 8>}, {pipeline_mode = #tpu.pipeline_mode<synchronous>, transform_indices = @transform_6, window_bounds = array<i64: 1, 8>}, {transform_indices = @transform_7, window_bounds = array<i64: 8, 8>}]} {
    %c0 = arith.constant 0 : index
    %c0_0 = arith.constant 0 : index
    %0 = vector.load %arg1[%c0, %c0_0] : memref<8x16xf32, #tpu.memory_space<vmem>>, vector<8x16xf32>
    %c0_1 = arith.constant 0 : index
    %c0_2 = arith.constant 0 : index
    %1 = vector.load %arg2[%c0_1, %c0_2] : memref<16x128xf32, #tpu.memory_space<vmem>>, vector<16x128xf32>
    %cst = arith.constant dense<0.000000e+00> : vector<8x128xf32>
    %2 = tpu.matmul %0, %1, %cst {dimension_numbers = #tpu.dot_dimension_numbers<[1], [0], [0], [1], [0, 0, 1, 1], [], []>} : vector<8x16xf32>, vector<16x128xf32>, vector<8x128xf32> -> vector<8x128xf32>
    %c0_3 = arith.constant 0 : index
    %c0_4 = arith.constant 0 : index
    %3 = vector.load %arg3[%c0_3, %c0_4] : memref<1x128xf32, #tpu.memory_space<vmem>>, vector<1x128xf32>
    %4 = vector.broadcast %3 : vector<1x128xf32> to vector<8x128xf32>
    %5 = arith.addf %2, %4 : vector<8x128xf32>
    %cst_5 = arith.constant 0.000000e+00 : f32
    %6 = vector.broadcast %cst_5 : f32 to vector<8x128xf32>
    %7 = arith.maximumf %5, %6 : vector<8x128xf32>
    %c0_6 = arith.constant 0 : index
    %c0_7 = arith.constant 0 : index
    %8 = vector.load %arg4[%c0_6, %c0_7] : memref<128x256xf32, #tpu.memory_space<vmem>>, vector<128x256xf32>
    %cst_8 = arith.constant dense<0.000000e+00> : vector<8x256xf32>
    %9 = tpu.matmul %7, %8, %cst_8 {dimension_numbers = #tpu.dot_dimension_numbers<[1], [0], [0], [1], [0, 0, 1, 1], [], []>} : vector<8x128xf32>, vector<128x256xf32>, vector<8x256xf32> -> vector<8x256xf32>
    %c0_9 = arith.constant 0 : index
    %c0_10 = arith.constant 0 : index
    %10 = vector.load %arg5[%c0_9, %c0_10] : memref<1x256xf32, #tpu.memory_space<vmem>>, vector<1x256xf32>
    %11 = vector.broadcast %10 : vector<1x256xf32> to vector<8x256xf32>
    %12 = arith.addf %9, %11 : vector<8x256xf32>
    %cst_11 = arith.constant 0.000000e+00 : f32
    %13 = vector.broadcast %cst_11 : f32 to vector<8x256xf32>
    %14 = arith.maximumf %12, %13 : vector<8x256xf32>
    %c0_12 = arith.constant 0 : index
    %c0_13 = arith.constant 0 : index
    %15 = vector.load %arg6[%c0_12, %c0_13] : memref<256x8xf32, #tpu.memory_space<vmem>>, vector<256x8xf32>
    %cst_14 = arith.constant dense<0.000000e+00> : vector<8x8xf32>
    %16 = tpu.matmul %14, %15, %cst_14 {dimension_numbers = #tpu.dot_dimension_numbers<[1], [0], [0], [1], [0, 0, 1, 1], [], []>} : vector<8x256xf32>, vector<256x8xf32>, vector<8x8xf32> -> vector<8x8xf32>
    %c0_15 = arith.constant 0 : index
    %c0_16 = arith.constant 0 : index
    %17 = vector.load %arg7[%c0_15, %c0_16] : memref<1x8xf32, #tpu.memory_space<vmem>>, vector<1x8xf32>
    %18 = vector.broadcast %17 : vector<1x8xf32> to vector<8x8xf32>
    %19 = arith.addf %16, %18 : vector<8x8xf32>
    %c0_17 = arith.constant 0 : index
    %c0_18 = arith.constant 0 : index
    %20 = vector.load %arg8[%c0_17, %c0_18] : memref<8x8xf32, #tpu.memory_space<vmem>>, vector<8x8xf32>
    tpu.vector_store %arg8[%c0_17, %c0_18], %19 {strides = array<i32>} : memref<8x8xf32, #tpu.memory_space<vmem>>, vector<8x8xf32>,
    return
  }
  func.func @transform_0(%arg0: i32) -> (i32, i32) {
    %c0_i32 = arith.constant 0 : i32
    %c0_i32_0 = arith.constant 0 : i32
    return %arg0, %c0_i32 : i32, i32
  }
  func.func @transform_1(%arg0: i32) -> (i32, i32) {
    %c0_i32 = arith.constant 0 : i32
    %c0_i32_0 = arith.constant 0 : i32
    %c0_i32_1 = arith.constant 0 : i32
    return %c0_i32, %c0_i32_0 : i32, i32
  }
  func.func @transform_2(%arg0: i32) -> (i32, i32) {
    %c0_i32 = arith.constant 0 : i32
    %c0_i32_0 = arith.constant 0 : i32
    %c0_i32_1 = arith.constant 0 : i32
    return %c0_i32, %c0_i32_0 : i32, i32
  }
  func.func @transform_3(%arg0: i32) -> (i32, i32) {
    %c0_i32 = arith.constant 0 : i32
    %c0_i32_0 = arith.constant 0 : i32
    %c0_i32_1 = arith.constant 0 : i32
    return %c0_i32, %c0_i32_0 : i32, i32
  }
  func.func @transform_4(%arg0: i32) -> (i32, i32) {
    %c0_i32 = arith.constant 0 : i32
    %c0_i32_0 = arith.constant 0 : i32
    %c0_i32_1 = arith.constant 0 : i32
    return %c0_i32, %c0_i32_0 : i32, i32
  }
  func.func @transform_5(%arg0: i32) -> (i32, i32) {
    %c0_i32 = arith.constant 0 : i32
    %c0_i32_0 = arith.constant 0 : i32
    %c0_i32_1 = arith.constant 0 : i32
    return %c0_i32, %c0_i32_0 : i32, i32
  }
  func.func @transform_6(%arg0: i32) -> (i32, i32) {
    %c0_i32 = arith.constant 0 : i32
    %c0_i32_0 = arith.constant 0 : i32
    %c0_i32_1 = arith.constant 0 : i32
    return %c0_i32, %c0_i32_0 : i32, i32
  }
  func.func @transform_7(%arg0: i32) -> (i32, i32) {
    %c0_i32 = arith.constant 0 : i32
    %c0_i32_0 = arith.constant 0 : i32
    return %arg0, %c0_i32 : i32, i32
  }
}

</mosaic_0001>

<llo_original>
// kernel: tpu_custom_call.1
$region0: #{tpu_custom_call.1}
  #allocation0 [shape = 'u32[]', space=smem, size = 0x4, offset = 0x4, fixed_abs, tag = 'smem constant byte address 0x4 - core index']
  #allocation1 [shape = 'u32[72,128]{1,0:T(1,128)}', space=vmem, size = 0x9000, scoped, tag = 'internal scratch']
  %s0 = inlined_call_operand.hbm [shape: f32[8,16], index: 0, kind: input, shape index: {}]
  %s1 = inlined_call_operand.vmem [shape: f32[16,128], index: 1, kind: input, shape index: {}]
  %s2 = inlined_call_operand.hbm [shape: f32[1,128], index: 2, kind: input, shape index: {}]
  %s3 = inlined_call_operand.vmem [shape: f32[128,256], index: 3, kind: input, shape index: {}]
  %s4 = inlined_call_operand.vmem [shape: f32[1,256], index: 4, kind: input, shape index: {}]
  %s5 = inlined_call_operand.vmem [shape: f32[256,8], index: 5, kind: input, shape index: {}]
  %s6 = inlined_call_operand.vmem [shape: f32[1,8], index: 6, kind: input, shape index: {}]
  %s7 = inlined_call_operand.hbm [shape: f32[8,8], index: 7, kind: output, shape index: {}]
  %s8 = sld [smem:[#allocation0]]
  $region46: #{tpu_custom_call.1} parent=0
    _
  %s10 = ssub.s32 1, %s8
  %s11 = scalar_select 0, %s10, %s8
  $region1: #{tpu_custom_call.1} parent=0
    #allocation2 [shape = 'u8[4096]{0}', space=vmem, size = 0x1000, scoped, tag = 'input window, operand 0, single buffered']
    #allocation3 [shape = 's32[1]{0}', space=sflag, size = 0x4, scoped, tag = 'scoped memory for tpu_custom_call.1']
    #allocation4 [shape = 's32[1]{0}', space=sflag, size = 0x4, scoped, tag = 'scoped memory for tpu_custom_call.1']
    #allocation5 [shape = 'u8[512]{0}', space=vmem, size = 0x400, scoped, tag = 'input window, operand 2, single buffered']
    #allocation6 [shape = 's32[1]{0}', space=sflag, size = 0x4, scoped, tag = 'scoped memory for tpu_custom_call.1']
    #allocation7 [shape = 'u8[4096]{0}', space=vmem, size = 0x1000, scoped, tag = 'output window, operand 0, single buffered']
    %12 = vsyncpa [#allocation3], 0
    %13 = vsyncpa [#allocation6], 0
    %14 = vsyncpa [#allocation4], 0
    // Predicated region
    $region2: #{tpu_custom_call.1} parent=1 // pred_check
      _
    $region3: #{tpu_custom_call.1} parent=1 // pred_check_branch
      %16 = sbr.rel (0) target = $region5
    $region4: #{tpu_custom_call.1} parent=1 // pred_region
      %18 = vsyncadd [#allocation3], 0
      %s20 = sshll.u32 %s0, 4
      %s21 = int_to_ptr.hbm [resolvable:$true] %s20
      %s22 = sshll.u32 [#allocation2], 4
      %s23 = int_to_ptr.vmem [resolvable:$true] %s22
      %25 = dma.hbm_to_vmem [thread:$0]  %s21, 128, %s23, [#allocation3]
    $region5: #{tpu_custom_call.1} parent=1 // pred_fallthru
      _
    // Predicated region
    $region6: #{tpu_custom_call.1} parent=1 // pred_check
      _
    $region7: #{tpu_custom_call.1} parent=1 // pred_check_branch
      %27 = sbr.rel (0) target = $region9
    $region8: #{tpu_custom_call.1} parent=1 // pred_region
      _
    $region9: #{tpu_custom_call.1} parent=1 // pred_fallthru
      _
    // Predicated region
    $region10: #{tpu_custom_call.1} parent=1 // pred_check
      _
    $region11: #{tpu_custom_call.1} parent=1 // pred_check_branch
      %29 = sbr.rel (0) target = $region13
    $region12: #{tpu_custom_call.1} parent=1 // pred_region
      %31 = vsyncadd [#allocation6], 0
      %s33 = sshll.u32 %s2, 4
      %s34 = int_to_ptr.hbm [resolvable:$true] %s33
      %s35 = sshll.u32 [#allocation5], 4
      %s36 = int_to_ptr.vmem [resolvable:$true] %s35
      %38 = dma.hbm_to_vmem [thread:$0]  %s34, 16, %s36, [#allocation6]
    $region13: #{tpu_custom_call.1} parent=1 // pred_fallthru
      _
    // Predicated region
    $region14: #{tpu_custom_call.1} parent=1 // pred_check
      _
    $region15: #{tpu_custom_call.1} parent=1 // pred_check_branch
      %40 = sbr.rel (0) target = $region17
    $region16: #{tpu_custom_call.1} parent=1 // pred_region
      _
    $region17: #{tpu_custom_call.1} parent=1 // pred_fallthru
      _
    // Predicated region
    $region18: #{tpu_custom_call.1} parent=1 // pred_check
      _
    $region19: #{tpu_custom_call.1} parent=1 // pred_check_branch
      %42 = sbr.rel (0) target = $region21
    $region20: #{tpu_custom_call.1} parent=1 // pred_region
      _
    $region21: #{tpu_custom_call.1} parent=1 // pred_fallthru
      _
    // Predicated region
    $region22: #{tpu_custom_call.1} parent=1 // pred_check
      _
    $region23: #{tpu_custom_call.1} parent=1 // pred_check_branch
      %44 = sbr.rel (0) target = $region25
    $region24: #{tpu_custom_call.1} parent=1 // pred_region
      _
    $region25: #{tpu_custom_call.1} parent=1 // pred_fallthru
      _
    // Predicated region
    $region26: #{tpu_custom_call.1} parent=1 // pred_check
      _
    $region27: #{tpu_custom_call.1} parent=1 // pred_check_branch
      %46 = sbr.rel (0) target = $region29
    $region28: #{tpu_custom_call.1} parent=1 // pred_region
      _
    $region29: #{tpu_custom_call.1} parent=1 // pred_fallthru
      _
    // Predicated region
    $region30: #{tpu_custom_call.1} parent=1 // pred_check
      _
    $region31: #{tpu_custom_call.1} parent=1 // pred_check_branch
      %48 = sbr.rel (0) target = $region33
    $region32: #{tpu_custom_call.1} parent=1 // pred_region
      %50 = dma.done [#allocation3], 128
    $region33: #{tpu_custom_call.1} parent=1 // pred_fallthru
      _
    // Predicated region
    $region34: #{tpu_custom_call.1} parent=1 // pred_check
      _
    $region35: #{tpu_custom_call.1} parent=1 // pred_check_branch
      %52 = sbr.rel (0) target = $region37
    $region36: #{tpu_custom_call.1} parent=1 // pred_region
      %54 = dma.done [#allocation6], 16
    $region37: #{tpu_custom_call.1} parent=1 // pred_fallthru
      _
    %v55 = vld [vmem:[#allocation2] sm:$0xff]
    %v56 = vld [vmem:[%s1] sm:$0xff]
    %v57 = vld [vmem:[%s1 + $0x8] sm:$0xff]
    %v58 = vld [vmem:[#allocation5] sm:$0x1]
    %v60 = vperm.slane %v58, 0
    %vm62 = vcmask 130048
    %v64 = vsel %vm62, %v55, 0
    %66 = vmatpush.msra.mxu0 0.0
    %67 = vmatpush.msra.mxu0 0.0
    %68 = vmatpush.msra.mxu0 0.0
    %69 = vmatpush.msra.mxu0 0.0
    %70 = vmatpush.msra.mxu0 0.0
    %71 = vmatpush.msra.mxu0 0.0
    %72 = vmatpush.msra.mxu0 0.0
    %73 = vmatpush.msra.mxu0 0.0
    %74 = vmatpush.msra.mxu0 0.0
    %75 = vmatpush.msra.mxu0 0.0
    %76 = vmatpush.msra.mxu0 0.0
    %77 = vmatpush.msra.mxu0 0.0
    %78 = vmatpush.msra.mxu0 0.0
    %79 = vmatpush.msra.mxu0 0.0
    %80 = vmatpush.msra.mxu0 %v57
    %81 = vmatpush.msra.mxu0 %v56
    %82 = vmatmul.f32.gmra.mxu0 %v64
    %v83 = vpop.f32.mrf.mxu0
    %v84 = vadd.f32 %v60, %v83
    %85 = vdwg.mxu0
    %v86 = vmax.f32 %v84, 0.0
    %v87 = vld [vmem:[%s3] sm:$0xff]
    %v88 = vld [vmem:[%s3 + $0x8] sm:$0xff]
    %v89 = vld [vmem:[%s3 + $0x10] sm:$0xff]
    %v90 = vld [vmem:[%s3 + $0x18] sm:$0xff]
    %v91 = vld [vmem:[%s3 + $0x20] sm:$0xff]
    %v92 = vld [vmem:[%s3 + $0x28] sm:$0xff]
    %v93 = vld [vmem:[%s3 + $0x30] sm:$0xff]
    %v94 = vld [vmem:[%s3 + $0x38] sm:$0xff]
    %v95 = vld [vmem:[%s3 + $0x40] sm:$0xff]
    %v96 = vld [vmem:[%s3 + $0x48] sm:$0xff]
    %v97 = vld [vmem:[%s3 + $0x50] sm:$0xff]
    %v98 = vld [vmem:[%s3 + $0x58] sm:$0xff]
    %v99 = vld [vmem:[%s3 + $0x60] sm:$0xff]
    %v100 = vld [vmem:[%s3 + $0x68] sm:$0xff]
    %v101 = vld [vmem:[%s3 + $0x70] sm:$0xff]
    %v102 = vld [vmem:[%s3 + $0x78] sm:$0xff]
    %v103 = vld [vmem:[%s3 + $0x80] sm:$0xff]
    %v104 = vld [vmem:[%s3 + $0x88] sm:$0xff]
    %v105 = vld [vmem:[%s3 + $0x90] sm:$0xff]
    %v106 = vld [vmem:[%s3 + $0x98] sm:$0xff]
    %v107 = vld [vmem:[%s3 + $0xa0] sm:$0xff]
    %v108 = vld [vmem:[%s3 + $0xa8] sm:$0xff]
    %v109 = vld [vmem:[%s3 + $0xb0] sm:$0xff]
    %v110 = vld [vmem:[%s3 + $0xb8] sm:$0xff]
    %v111 = vld [vmem:[%s3 + $0xc0] sm:$0xff]
    %v112 = vld [vmem:[%s3 + $0xc8] sm:$0xff]
    %v113 = vld [vmem:[%s3 + $0xd0] sm:$0xff]
    %v114 = vld [vmem:[%s3 + $0xd8] sm:$0xff]
    %v115 = vld [vmem:[%s3 + $0xe0] sm:$0xff]
    %v116 = vld [vmem:[%s3 + $0xe8] sm:$0xff]
    %v117 = vld [vmem:[%s3 + $0xf0] sm:$0xff]
    %v118 = vld [vmem:[%s3 + $0xf8] sm:$0xff]
    %v119 = vld [vmem:[%s4] sm:$0x3]
    %v121 = vperm.slane %v119, 0
    %v122 = vperm.slane %v119, 1
    %125 = vmatpush.msra.mxu0 %v117
    %126 = vmatpush.msra.mxu0 %v115
    %127 = vmatpush.msra.mxu0 %v113
    %128 = vmatpush.msra.mxu0 %v111
    %129 = vmatpush.msra.mxu0 %v109
    %130 = vmatpush.msra.mxu0 %v107
    %131 = vmatpush.msra.mxu0 %v105
    %132 = vmatpush.msra.mxu0 %v103
    %133 = vmatpush.msra.mxu0 %v101
    %134 = vmatpush.msra.mxu0 %v99
    %135 = vmatpush.msra.mxu0 %v97
    %136 = vmatpush.msra.mxu0 %v95
    %137 = vmatpush.msra.mxu0 %v93
    %138 = vmatpush.msra.mxu0 %v91
    %139 = vmatpush.msra.mxu0 %v89
    %140 = vmatpush.msra.mxu0 %v87
    %141 = vmatmul.f32.gmra.mxu0 %v86
    %v142 = vpop.f32.mrf.mxu0
    %v143 = vadd.f32 %v121, %v142
    %144 = vdwg.mxu0
    %145 = vmatpush.msra.mxu0 %v118
    %146 = vmatpush.msra.mxu0 %v116
    %147 = vmatpush.msra.mxu0 %v114
    %148 = vmatpush.msra.mxu0 %v112
    %149 = vmatpush.msra.mxu0 %v110
    %150 = vmatpush.msra.mxu0 %v108
    %151 = vmatpush.msra.mxu0 %v106
    %152 = vmatpush.msra.mxu0 %v104
    %153 = vmatpush.msra.mxu0 %v102
    %154 = vmatpush.msra.mxu0 %v100
    %155 = vmatpush.msra.mxu0 %v98
    %156 = vmatpush.msra.mxu0 %v96
    %157 = vmatpush.msra.mxu0 %v94
    %158 = vmatpush.msra.mxu0 %v92
    %159 = vmatpush.msra.mxu0 %v90
    %160 = vmatpush.msra.mxu0 %v88
    %161 = vmatmul.f32.gmra.mxu0 %v86
    %v162 = vpop.f32.mrf.mxu0
    %v163 = vadd.f32 %v122, %v162
    %164 = vdwg.mxu0
    %v165 = vmax.f32 %v143, 0.0
    %v166 = vmax.f32 %v163, 0.0
    %v167 = vld [vmem:[%s5] sm:$0xff]
    %v168 = vld [vmem:[%s5 + $0x8] sm:$0xff]
    %v169 = vld [vmem:[%s5 + $0x10] sm:$0xff]
    %v170 = vld [vmem:[%s5 + $0x18] sm:$0xff]
    %v171 = vld [vmem:[%s5 + $0x20] sm:$0xff]
    %v172 = vld [vmem:[%s5 + $0x28] sm:$0xff]
    %v173 = vld [vmem:[%s5 + $0x30] sm:$0xff]
    %v174 = vld [vmem:[%s5 + $0x38] sm:$0xff]
    %v175 = vld [vmem:[%s5 + $0x40] sm:$0xff]
    %v176 = vld [vmem:[%s5 + $0x48] sm:$0xff]
    %v177 = vld [vmem:[%s5 + $0x50] sm:$0xff]
    %v178 = vld [vmem:[%s5 + $0x58] sm:$0xff]
    %v179 = vld [vmem:[%s5 + $0x60] sm:$0xff]
    %v180 = vld [vmem:[%s5 + $0x68] sm:$0xff]
    %v181 = vld [vmem:[%s5 + $0x70] sm:$0xff]
    %v182 = vld [vmem:[%s5 + $0x78] sm:$0xff]
    %v183 = vld [vmem:[%s5 + $0x80] sm:$0xff]
    %v184 = vld [vmem:[%s5 + $0x88] sm:$0xff]
    %v185 = vld [vmem:[%s5 + $0x90] sm:$0xff]
    %v186 = vld [vmem:[%s5 + $0x98] sm:$0xff]
    %v187 = vld [vmem:[%s5 + $0xa0] sm:$0xff]
    %v188 = vld [vmem:[%s5 + $0xa8] sm:$0xff]
    %v189 = vld [vmem:[%s5 + $0xb0] sm:$0xff]
    %v190 = vld [vmem:[%s5 + $0xb8] sm:$0xff]
    %v191 = vld [vmem:[%s5 + $0xc0] sm:$0xff]
    %v192 = vld [vmem:[%s5 + $0xc8] sm:$0xff]
    %v193 = vld [vmem:[%s5 + $0xd0] sm:$0xff]
    %v194 = vld [vmem:[%s5 + $0xd8] sm:$0xff]
    %v195 = vld [vmem:[%s5 + $0xe0] sm:$0xff]
    %v196 = vld [vmem:[%s5 + $0xe8] sm:$0xff]
    %v197 = vld [vmem:[%s5 + $0xf0] sm:$0xff]
    %v198 = vld [vmem:[%s5 + $0xf8] sm:$0xff]
    %v199 = vld [vmem:[%s6] sm:$0x1]
    %v201 = vperm.slane %v199, 0
    %203 = vmatpush.msra.mxu0 %v182
    %204 = vmatpush.msra.mxu0 %v181
    %205 = vmatpush.msra.mxu0 %v180
    %206 = vmatpush.msra.mxu0 %v179
    %207 = vmatpush.msra.mxu0 %v178
    %208 = vmatpush.msra.mxu0 %v177
    %209 = vmatpush.msra.mxu0 %v176
    %210 = vmatpush.msra.mxu0 %v175
    %211 = vmatpush.msra.mxu0 %v174
    %212 = vmatpush.msra.mxu0 %v173
    %213 = vmatpush.msra.mxu0 %v172
    %214 = vmatpush.msra.mxu0 %v171
    %215 = vmatpush.msra.mxu0 %v170
    %216 = vmatpush.msra.mxu0 %v169
    %217 = vmatpush.msra.mxu0 %v168
    %218 = vmatpush.msra.mxu0 %v167
    %219 = vmatmul.f32.gmra.mxu0 %v165
    %v220 = vpop.f32.mrf.mxu0
    %v221 = vadd.f32 %v201, %v220
    %222 = vdwg.mxu0
    %223 = vmatpush.msra.mxu0 %v198
    %224 = vmatpush.msra.mxu0 %v197
    %225 = vmatpush.msra.mxu0 %v196
    %226 = vmatpush.msra.mxu0 %v195
    %227 = vmatpush.msra.mxu0 %v194
    %228 = vmatpush.msra.mxu0 %v193
    %229 = vmatpush.msra.mxu0 %v192
    %230 = vmatpush.msra.mxu0 %v191
    %231 = vmatpush.msra.mxu0 %v190
    %232 = vmatpush.msra.mxu0 %v189
    %233 = vmatpush.msra.mxu0 %v188
    %234 = vmatpush.msra.mxu0 %v187
    %235 = vmatpush.msra.mxu0 %v186
    %236 = vmatpush.msra.mxu0 %v185
    %237 = vmatpush.msra.mxu0 %v184
    %238 = vmatpush.msra.mxu0 %v183
    %239 = vmatmul.f32.gmra.mxu0 %v166
    %v240 = vpop.f32.mrf.mxu0
    %v241 = vadd.f32 %v221, %v240
    %242 = vdwg.mxu0
    %vm243 = vcmask 64512
    %244 = vst.msk [vmem:[#allocation7] sm:$0xff] %vm243, %v241
    // Predicated region
    $region38: #{tpu_custom_call.1} parent=1 // pred_check
      _
    $region39: #{tpu_custom_call.1} parent=1 // pred_check_branch
      %246 = sbr.rel (0) target = $region41
    $region40: #{tpu_custom_call.1} parent=1 // pred_region
      %248 = vsyncadd [#allocation4], 0
      %s250 = sshll.u32 [#allocation7], 4
      %s251 = int_to_ptr.vmem [resolvable:$true] %s250
      %s252 = sshll.u32 %s7, 4
      %s253 = int_to_ptr.hbm [resolvable:$true] %s252
      %255 = dma.vmem_to_hbm [thread:$0]  %s251, 128, %s253, [#allocation4]
    $region41: #{tpu_custom_call.1} parent=1 // pred_fallthru
      _
    // Predicated region
    $region42: #{tpu_custom_call.1} parent=1 // pred_check
      _
    $region43: #{tpu_custom_call.1} parent=1 // pred_check_branch
      %257 = sbr.rel (0) target = $region45
    $region44: #{tpu_custom_call.1} parent=1 // pred_region
      %259 = dma.done [#allocation4], 128
    $region45: #{tpu_custom_call.1} parent=1 // pred_fallthru
      _
    %260 = vsyncpa [#allocation3], 1
    %261 = vsyncpa [#allocation6], 1
    %262 = vsyncpa [#allocation4], 1

</llo_original>
